<compile_context>
chip_gen: v5e
topology: v5e:2x2
jax: 0.10.0
libtpu: 0.0.40
codegen_flags: <defaults>
</compile_context>

<pallas_src>
import functools

import jax
import jax.numpy as jnp
from jax.experimental import pallas as pl
from jax.experimental.pallas import tpu as pltpu


def _model_kernel(p_ref, o_ref, *, B, K, N):
    # p_ref: (8, 128) f32 packed tile  [rows 0:B -> x, rows B:B+K -> w_t, row B+K -> b]
    # o_ref: (1, N) f32
    p = p_ref[...]                       # one aligned vreg-tile load
    x = p[0:B, 0:K]                      # (B, K)
    w = p[B:B + K, 0:N]                  # (K, N)
    b = p[B + K:B + K + 1, 0:N]          # (1, N)

    # v1 = self.linear(x): unrolled VPU broadcast-FMA (no MXU for 96 MACs).
    acc = jnp.broadcast_to(b, (B, N))
    for k in range(K):                   # K == 3, static unroll
        acc = acc + x[:, k:k + 1] * w[k:k + 1, :]
    v1 = acc

    # v2 = v1.gt(0)
    v2 = v1 > 0.0
    # v3..v7: int/long cast chain folds to v7 = ~v2
    v7 = jnp.logical_not(v2)
    # v8 = v7 | v2   (tautologically True -> the rest is mathematically constant)
    v8 = jnp.logical_or(v7, v2)
    # v9 = v8.float(); v10 = v8.lt(0) == False; v11 = -0.5 (never zero)
    # v12 = v9 & v11 -> logical interpretation -> v8.float()
    v12 = v8.astype(jnp.float32)
    # v13 = v12.sum(0); v14 = exp; output = log(exp(v13)) == v13  (identity)
    o_ref[...] = jnp.sum(v12, axis=0, keepdims=True)


@jax.jit
def model_forward(x, w_t, b):
    """x: (B,3) f32, w_t: (3,8) f32 (pre-transposed weight), b: (1,8) f32 -> (8,) f32."""
    B, K = x.shape
    N = w_t.shape[1]
    assert B + K + 1 <= 8, "packed-tile layout assumes B + K + 1 <= 8 sublanes"

    # Consolidate the three tiny operands into one aligned (8,128) tile -> 1 DMA.
    packed = jnp.zeros((8, 128), jnp.float32)
    packed = packed.at[0:B, 0:K].set(x)
    packed = packed.at[B:B + K, 0:N].set(w_t)
    packed = packed.at[B + K:B + K + 1, 0:N].set(b)

    cost = pl.CostEstimate(
        flops=2 * B * K * N + 4 * B * N,
        transcendentals=0,
        bytes_accessed=4 * (8 * 128 + N),   # packed input tile + output write
    )
    out = pl.pallas_call(
        functools.partial(_model_kernel, B=B, K=K, N=N),
        out_shape=jax.ShapeDtypeStruct((1, N), jnp.float32),
        in_specs=[pl.BlockSpec(memory_space=pltpu.MemorySpace.VMEM)],
        out_specs=pl.BlockSpec(memory_space=pltpu.MemorySpace.VMEM),
        cost_estimate=cost,
    )(packed)
    return out[0]                        # (8,) matches PyTorch v12.sum(0) shape


if __name__ == "__main__":
    key = jax.random.PRNGKey(0)
    kx, kw, kb = jax.random.split(key, 3)

    B, IN, OUT = 4, 3, 8
    # Deterministic "Linear(3, 8)"-style init: U(-1/sqrt(in), 1/sqrt(in)).
    bound = 1.0 / jnp.sqrt(jnp.float32(IN))
    w = jax.random.uniform(kw, (OUT, IN), jnp.float32, -bound, bound)
    b = jax.random.uniform(kb, (1, OUT), jnp.float32, -bound, bound)
    x = jax.random.normal(kx, (B, IN), jnp.float32)

    w_t = w.T  # (3, 8): kernel computes x @ W^T + b row-major

    out = model_forward(x, w_t, b)
    jax.block_until_ready(out)

    assert out.shape == (OUT,)
    assert out.dtype == jnp.float32
    # Under the documented interpretation the chain folds to float(B) per lane.
    assert bool(jnp.allclose(out, jnp.float32(B))), out
    print("KERNEL_OK")
</pallas_src>

<mosaic_0001>
module attributes {stable_mosaic.version = 11 : i64} {
  func.func @_model_kernel(%arg0: memref<8x128xf32, #tpu.memory_space<vmem>>, %arg1: memref<1x8xf32, #tpu.memory_space<vmem>>) attributes {dimension_semantics = [], scalar_prefetch = 0 : i64, scratch_operands = 0 : i64, tpu.core_type = #tpu.core_type<tc>} {
    %c0 = arith.constant 0 : index
    %c0_0 = arith.constant 0 : index
    %0 = vector.load %arg0[%c0, %c0_0] : memref<8x128xf32, #tpu.memory_space<vmem>>, vector<8x128xf32>
    %1 = vector.extract_strided_slice %0 {offsets = [0, 0], sizes = [4, 3], strides = [1, 1]} : vector<8x128xf32> to vector<4x3xf32>
    %2 = vector.extract_strided_slice %0 {offsets = [4, 0], sizes = [3, 8], strides = [1, 1]} : vector<8x128xf32> to vector<3x8xf32>
    %3 = vector.extract_strided_slice %0 {offsets = [7, 0], sizes = [1, 8], strides = [1, 1]} : vector<8x128xf32> to vector<1x8xf32>
    %4 = vector.shape_cast %3 : vector<1x8xf32> to vector<1x8xf32>
    %5 = vector.broadcast %4 : vector<1x8xf32> to vector<4x8xf32>
    %6 = vector.extract_strided_slice %1 {offsets = [0, 0], sizes = [4, 1], strides = [1, 1]} : vector<4x3xf32> to vector<4x1xf32>
    %7 = vector.extract_strided_slice %2 {offsets = [0, 0], sizes = [1, 8], strides = [1, 1]} : vector<3x8xf32> to vector<1x8xf32>
    %8 = vector.broadcast %6 : vector<4x1xf32> to vector<4x8xf32>
    %9 = vector.broadcast %7 : vector<1x8xf32> to vector<4x8xf32>
    %10 = arith.mulf %8, %9 : vector<4x8xf32>
    %11 = arith.addf %5, %10 : vector<4x8xf32>
    %12 = vector.extract_strided_slice %1 {offsets = [0, 1], sizes = [4, 1], strides = [1, 1]} : vector<4x3xf32> to vector<4x1xf32>
    %13 = vector.extract_strided_slice %2 {offsets = [1, 0], sizes = [1, 8], strides = [1, 1]} : vector<3x8xf32> to vector<1x8xf32>
    %14 = vector.broadcast %12 : vector<4x1xf32> to vector<4x8xf32>
    %15 = vector.broadcast %13 : vector<1x8xf32> to vector<4x8xf32>
    %16 = arith.mulf %14, %15 : vector<4x8xf32>
    %17 = arith.addf %11, %16 : vector<4x8xf32>
    %18 = vector.extract_strided_slice %1 {offsets = [0, 2], sizes = [4, 1], strides = [1, 1]} : vector<4x3xf32> to vector<4x1xf32>
    %19 = vector.extract_strided_slice %2 {offsets = [2, 0], sizes = [1, 8], strides = [1, 1]} : vector<3x8xf32> to vector<1x8xf32>
    %20 = vector.broadcast %18 : vector<4x1xf32> to vector<4x8xf32>
    %21 = vector.broadcast %19 : vector<1x8xf32> to vector<4x8xf32>
    %22 = arith.mulf %20, %21 : vector<4x8xf32>
    %23 = arith.addf %17, %22 : vector<4x8xf32>
    %cst = arith.constant 0.000000e+00 : f32
    %24 = vector.broadcast %cst : f32 to vector<4x8xf32>
    %25 = arith.cmpf ogt, %23, %24 : vector<4x8xf32>
    %cst_1 = arith.constant dense<true> : vector<4x8xi1>
    %26 = arith.xori %25, %cst_1 : vector<4x8xi1>
    %27 = arith.ori %26, %25 : vector<4x8xi1>
    %28 = arith.extui %27 : vector<4x8xi1> to vector<4x8xi32>
    %29 = arith.sitofp %28 : vector<4x8xi32> to vector<4x8xf32>
    %cst_2 = arith.constant dense<0.000000e+00> : vector<8xf32>
    %30 = vector.multi_reduction <add>, %29, %cst_2 [0] : vector<4x8xf32> to vector<8xf32>
    %31 = vector.shape_cast %30 : vector<8xf32> to vector<1x8xf32>
    %c0_3 = arith.constant 0 : index
    %c0_4 = arith.constant 0 : index
    %32 = vector.load %arg1[%c0_3, %c0_4] : memref<1x8xf32, #tpu.memory_space<vmem>>, vector<1x8xf32>
    tpu.vector_store %arg1[%c0_3, %c0_4], %31 {strides = array<i32>} : memref<1x8xf32, #tpu.memory_space<vmem>>, vector<1x8xf32>,
    return
  }
}

</mosaic_0001>

<llo_original>
// kernel: model_forward.1
$region0: #{model_forward.1}
  #allocation0 [shape = 'u32[]', space=smem, size = 0x4, offset = 0x4, fixed_abs, tag = 'smem constant byte address 0x4 - core index']
  #allocation1 [shape = 'u32[72,128]{1,0:T(1,128)}', space=vmem, size = 0x9000, scoped, tag = 'internal scratch']
  %s0 = inlined_call_operand.vmem [shape: f32[8,128], index: 0, kind: input, shape index: {}]
  %s1 = inlined_call_operand.hbm [shape: f32[1,8], index: 1, kind: output, shape index: {}]
  %s2 = sld [smem:[#allocation0]]
  $region14: #{model_forward.1} parent=0
    _
  %s4 = ssub.s32 1, %s2
  %s5 = scalar_select 0, %s4, %s2
  $region1: #{model_forward.1} parent=0
    #allocation2 [shape = 'u8[512]{0}', space=vmem, size = 0x400, scoped, tag = 'output window, operand 0, single buffered']
    #allocation3 [shape = 's32[1]{0}', space=sflag, size = 0x4, scoped, tag = 'scoped memory for model_forward.1']
    %6 = vsyncpa [#allocation3], 0
    // Predicated region
    $region2: #{model_forward.1} parent=1 // pred_check
      _
    $region3: #{model_forward.1} parent=1 // pred_check_branch
      %8 = sbr.rel (0) target = $region5
    $region4: #{model_forward.1} parent=1 // pred_region
      _
    $region5: #{model_forward.1} parent=1 // pred_fallthru
      _
    %vm9 = vcmask 1043456
    %v10 = vsel %vm9, 1.0, 0.0
    %v11 = vrot.slane %v10, 4
    %v12 = vadd.f32 %v10, %v11
    %v13 = vrot.slane %v12, 2
    %v14 = vadd.f32 %v12, %v13
    %v15 = vrot.slane %v14, 1
    %v16 = vadd.f32 %v14, %v15
    %vm17 = vcmask 57344
    %18 = vst.msk [vmem:[#allocation2] sm:$0x1] %vm17, %v16
    // Predicated region
    $region6: #{model_forward.1} parent=1 // pred_check
      _
    $region7: #{model_forward.1} parent=1 // pred_check_branch
      %20 = sbr.rel (0) target = $region9
    $region8: #{model_forward.1} parent=1 // pred_region
      %22 = vsyncadd [#allocation3], 0
      %s24 = sshll.u32 [#allocation2], 4
      %s25 = int_to_ptr.vmem [resolvable:$true] %s24
      %s26 = sshll.u32 %s1, 4
      %s27 = int_to_ptr.hbm [resolvable:$true] %s26
      %29 = dma.vmem_to_hbm [thread:$0]  %s25, 16, %s27, [#allocation3]
    $region9: #{model_forward.1} parent=1 // pred_fallthru
      _
    // Predicated region
    $region10: #{model_forward.1} parent=1 // pred_check
      _
    $region11: #{model_forward.1} parent=1 // pred_check_branch
      %31 = sbr.rel (0) target = $region13
    $region12: #{model_forward.1} parent=1 // pred_region
      %33 = dma.done [#allocation3], 16
    $region13: #{model_forward.1} parent=1 // pred_fallthru
      _
    %34 = vsyncpa [#allocation3], 1

</llo_original>
